<compile_context>
chip_gen: v6e
topology: v6e:2x2x1
jax: 0.10.0
libtpu: 0.0.40
codegen_flags: <defaults>
</compile_context>

<pallas_src>
import jax
import jax.numpy as jnp
from jax.experimental import pallas as pl
from jax.experimental.pallas import tpu as pltpu

_LANES = 128


def _round_up(x, m):
    return (x + m - 1) // m * m


def _cdiv(a, b):
    return (a + b - 1) // b


# ----------------------------- kernels --------------------------------------


def _nll_weighted_kernel(pred_ref, tgt_ref, w_ref, loss_ref, wsum_ref):
    i = pl.program_id(1)

    @pl.when(i == 0)
    def _init():
        loss_ref[...] = jnp.zeros_like(loss_ref)
        wsum_ref[...] = jnp.zeros_like(wsum_ref)

    p = pred_ref[...].astype(jnp.float32)          # (TN, C) f32 log-probs
    tgt = tgt_ref[...]                             # (TN, 1) int32
    w = w_ref[...].astype(jnp.float32)             # (1, C)  f32 class weights

    class_ids = jax.lax.broadcasted_iota(jnp.int32, p.shape, 1)
    mask = class_ids == tgt                        # (TN, C) one-hot(target) as bool

    contrib = jnp.where(mask, p * w, 0.0)          # w[t_i] * pred[i, t_i] per row
    wsel = jnp.where(mask, w, 0.0)                 # w[t_i] per row

    loss_ref[...] += -jnp.sum(contrib)
    wsum_ref[...] += jnp.sum(wsel)


def _nll_unweighted_kernel(pred_ref, tgt_ref, loss_ref):
    i = pl.program_id(1)

    @pl.when(i == 0)
    def _init():
        loss_ref[...] = jnp.zeros_like(loss_ref)

    p = pred_ref[...].astype(jnp.float32)          # (TN, C)
    tgt = tgt_ref[...]                             # (TN, 1)

    class_ids = jax.lax.broadcasted_iota(jnp.int32, p.shape, 1)
    mask = class_ids == tgt
    loss_ref[...] += -jnp.sum(jnp.where(mask, p, 0.0))


# ----------------------------- driver ---------------------------------------


def _tiling(n, c, itemsize, num_splits, target_tile_bytes):
    """Pick rows-per-tile (multiple of 8), tiles per split, padded row count."""
    row_bytes = max(1, c * itemsize)
    rows_budget = max(8, (target_tile_bytes // row_bytes) // 8 * 8)
    rows_cap = _round_up(max(1, _cdiv(n, num_splits)), 8)
    tn = min(rows_budget, rows_cap)
    tiles_per_split = _cdiv(n, num_splits * tn)
    padded_n = num_splits * tiles_per_split * tn
    return tn, tiles_per_split, padded_n


def _nll_sums(pred, target, weight=None, *, num_splits=2, target_tile_bytes=8 << 20):
    """Streams pred (N, C) through VMEM; returns per-split partial sums.

    Returns (loss_parts, wsum_parts), each of shape (num_splits,) f32;
    wsum_parts is None when weight is None.
    """
    n, c = pred.shape
    itemsize = jnp.dtype(pred.dtype).itemsize
    tn, tiles_per_split, padded_n = _tiling(n, c, itemsize, num_splits,
                                            target_tile_bytes)

    tgt = target.astype(jnp.int32).reshape(n, 1)
    if padded_n != n:
        # Padded rows carry target=-1, which matches no class -> contributes 0.
        pred = jnp.pad(pred, ((0, padded_n - n), (0, 0)))
        tgt = jnp.pad(tgt, ((0, padded_n - n), (0, 0)), constant_values=-1)

    def row_block(s, i):
        return (s * tiles_per_split + i, 0)

    in_specs = [
        pl.BlockSpec((tn, c), row_block),          # pred tile, native dtype
        pl.BlockSpec((tn, 1), row_block),          # target tile
    ]
    inputs = [pred, tgt]

    part_shape = jax.ShapeDtypeStruct((num_splits, 1, _LANES), jnp.float32)
    part_spec = pl.BlockSpec((1, 1, _LANES), lambda s, i: (s, 0, 0))

    if weight is None:
        kernel = _nll_unweighted_kernel
        out_shape = part_shape
        out_specs = part_spec
    else:
        kernel = _nll_weighted_kernel
        in_specs.append(pl.BlockSpec((1, c), lambda s, i: (0, 0)))
        inputs.append(weight.astype(jnp.float32).reshape(1, c))
        out_shape = (part_shape, part_shape)
        out_specs = (part_spec, part_spec)

    tile_bytes = tn * c * itemsize
    dbuf_bytes = 2 * (tile_bytes + tn * 4 + c * 4)          # double-buffered inputs
    vmem_limit = int(min(max(24 << 20, 2 * dbuf_bytes), 48 << 20))

    cost = pl.CostEstimate(
        flops=3 * n * c,
        transcendentals=0,
        bytes_accessed=n * c * itemsize + n * 4 + c * 4,
    )

    out = pl.pallas_call(
        kernel,
        out_shape=out_shape,
        grid_spec=pltpu.PrefetchScalarGridSpec(
            num_scalar_prefetch=0,
            grid=(num_splits, tiles_per_split),
            in_specs=in_specs,
            out_specs=out_specs,
        ),
        compiler_params=pltpu.CompilerParams(
            dimension_semantics=("parallel", "arbitrary"),
            vmem_limit_bytes=vmem_limit,
        ),
        cost_estimate=cost,
    )(*inputs)

    if weight is None:
        return out[:, 0, 0], None
    loss_parts, wsum_parts = out
    return loss_parts[:, 0, 0], wsum_parts[:, 0, 0]


class UnMaskedWeightedNLLLossPallas:
    """JAX/Pallas equivalent of the PyTorch UnMaskedWeightedNLLLoss module."""

    def __init__(self, weight=None):
        self.weight = None if weight is None else jnp.asarray(weight, jnp.float32)

    def __call__(self, pred, target):
        if self.weight is None:
            loss_parts, _ = _nll_sums(pred, target, None)
            return jnp.sum(loss_parts)
        loss_parts, wsum_parts = _nll_sums(pred, target, self.weight)
        return jnp.sum(loss_parts) / jnp.sum(wsum_parts)


# ----------------------------- reference & demo -----------------------------


def _reference(pred, target, weight=None):
    pred = pred.astype(jnp.float32)
    n, _ = pred.shape
    picked = pred[jnp.arange(n), target]
    if weight is None:
        return -jnp.sum(picked)
    w_t = weight[target]
    return -jnp.sum(w_t * picked) / jnp.sum(w_t)


if __name__ == "__main__":
    key = jax.random.PRNGKey(0)
    batch, seq_len, n_classes = 2, 8, 10
    N = batch * seq_len

    k1, k2, k3 = jax.random.split(key, 3)
    logits = jax.random.normal(k1, (N, n_classes), jnp.float32)
    pred = jax.nn.log_softmax(logits, axis=-1)                    # valid log-probs
    target = jax.random.randint(k2, (N,), 0, n_classes, jnp.int32)
    weight = jax.random.uniform(k3, (n_classes,), jnp.float32, 0.5, 1.5)

    # unweighted path (specialized kernel: no weight stream)
    loss_fn_u = UnMaskedWeightedNLLLossPallas(weight=None)
    out_u = jax.block_until_ready(loss_fn_u(pred, target))
    ref_u = _reference(pred, target, None)
    assert jnp.allclose(out_u, ref_u, rtol=1e-5, atol=1e-5), (out_u, ref_u)

    # weighted path
    loss_fn_w = UnMaskedWeightedNLLLossPallas(weight=weight)
    out_w = jax.block_until_ready(loss_fn_w(pred, target))
    ref_w = _reference(pred, target, weight)
    assert jnp.allclose(out_w, ref_w, rtol=1e-5, atol=1e-5), (out_w, ref_w)

    # native bf16 pred streamed without a wrapper-side upcast
    pred_bf16 = pred.astype(jnp.bfloat16)
    out_bf16 = jax.block_until_ready(loss_fn_w(pred_bf16, target))
    ref_bf16 = _reference(pred_bf16.astype(jnp.float32), target, weight)
    assert jnp.allclose(out_bf16, ref_bf16, rtol=1e-3, atol=1e-3), (out_bf16, ref_bf16)

    # ragged N (exercises the row-padding / target=-1 path)
    N2 = 14
    out_r = jax.block_until_ready(loss_fn_u(pred[:N2], target[:N2]))
    ref_r = _reference(pred[:N2], target[:N2], None)
    assert jnp.allclose(out_r, ref_r, rtol=1e-5, atol=1e-5), (out_r, ref_r)

    print("KERNEL_OK")
</pallas_src>

<mosaic_0001>
module attributes {stable_mosaic.version = 11 : i64} {
  func.func @_nll_unweighted_kernel(%arg0: i32, %arg1: i32, %arg2: memref<8x10xf32, #tpu.memory_space<vmem>>, %arg3: memref<8x1xi32, #tpu.memory_space<vmem>>, %arg4: memref<1x1x128xf32, #tpu.memory_space<vmem>>) attributes {dimension_semantics = [#tpu.dimension_semantics<parallel>, #tpu.dimension_semantics<arbitrary>], iteration_bounds = array<i64: 2, 1>, scalar_prefetch = 0 : i64, scratch_operands = 0 : i64, tpu.core_type = #tpu.core_type<tc>, window_params = [{transform_indices = @transform_0, window_bounds = array<i64: 8, 10>}, {transform_indices = @transform_1, window_bounds = array<i64: 8, 1>}, {transform_indices = @transform_2, window_bounds = array<i64: 1, 1, 128>}]} {
    %c0_i32 = arith.constant 0 : i32
    %0 = arith.cmpi eq, %arg1, %c0_i32 : i32
    %1 = arith.extui %0 : i1 to i32
    %c0_i32_0 = arith.constant 0 : i32
    %2 = arith.cmpi ne, %1, %c0_i32_0 : i32
    scf.if %2 {
      %cst_12 = arith.constant 0.000000e+00 : f32
      %19 = vector.broadcast %cst_12 : f32 to vector<1x1x128xf32>
      %c0_13 = arith.constant 0 : index
      %c0_14 = arith.constant 0 : index
      %c0_15 = arith.constant 0 : index
      %20 = vector.load %arg4[%c0_13, %c0_14, %c0_15] : memref<1x1x128xf32, #tpu.memory_space<vmem>>, vector<1x1x128xf32>
      tpu.vector_store %arg4[%c0_13, %c0_14, %c0_15], %19 {strides = array<i32>} : memref<1x1x128xf32, #tpu.memory_space<vmem>>, vector<1x1x128xf32>,
    } else {
    }
    %c0 = arith.constant 0 : index
    %c0_1 = arith.constant 0 : index
    %3 = vector.load %arg2[%c0, %c0_1] : memref<8x10xf32, #tpu.memory_space<vmem>>, vector<8x10xf32>
    %c0_2 = arith.constant 0 : index
    %c0_3 = arith.constant 0 : index
    %4 = vector.load %arg3[%c0_2, %c0_3] : memref<8x1xi32, #tpu.memory_space<vmem>>, vector<8x1xi32>
    %5 = tpu.iota {dimensions = array<i32: 1>} : vector<8x10xi32>
    %6 = vector.broadcast %4 : vector<8x1xi32> to vector<8x10xi32>
    %7 = arith.cmpi eq, %5, %6 : vector<8x10xi32>
    %c0_4 = arith.constant 0 : index
    %c0_5 = arith.constant 0 : index
    %c0_6 = arith.constant 0 : index
    %8 = vector.load %arg4[%c0_4, %c0_5, %c0_6] : memref<1x1x128xf32, #tpu.memory_space<vmem>>, vector<1x1x128xf32>
    %cst = arith.constant 0.000000e+00 : f32
    %9 = vector.broadcast %cst : f32 to vector<8x10xf32>
    %10 = arith.select %7, %3, %9 : vector<8x10xi1>, vector<8x10xf32>
    %11 = vector.shape_cast %10 : vector<8x10xf32> to vector<1x8x10xf32>
    %cst_7 = arith.constant dense<0.000000e+00> : vector<1xf32>
    %12 = vector.multi_reduction <add>, %11, %cst_7 [1, 2] : vector<1x8x10xf32> to vector<1xf32>
    %13 = vector.shape_cast %12 : vector<1xf32> to vector<1x1x1xf32>
    %14 = vector.extract %13[0, 0, 0] : f32 from vector<1x1x1xf32>
    %cst_8 = arith.constant 0.000000e+00 : f32
    %15 = arith.subf %cst_8, %14 : f32
    %16 = vector.broadcast %15 : f32 to vector<1x1x128xf32>
    %17 = arith.addf %8, %16 : vector<1x1x128xf32>
    %c0_9 = arith.constant 0 : index
    %c0_10 = arith.constant 0 : index
    %c0_11 = arith.constant 0 : index
    %18 = vector.load %arg4[%c0_9, %c0_10, %c0_11] : memref<1x1x128xf32, #tpu.memory_space<vmem>>, vector<1x1x128xf32>
    tpu.vector_store %arg4[%c0_9, %c0_10, %c0_11], %17 {strides = array<i32>} : memref<1x1x128xf32, #tpu.memory_space<vmem>>, vector<1x1x128xf32>,
    return
  }
  func.func @transform_0(%arg0: i32, %arg1: i32) -> (i32, i32) {
    %c1_i32 = arith.constant 1 : i32
    %0 = arith.muli %arg0, %c1_i32 : i32
    %1 = arith.addi %0, %arg1 : i32
    %c0_i32 = arith.constant 0 : i32
    %c0_i32_0 = arith.constant 0 : i32
    return %1, %c0_i32 : i32, i32
  }
  func.func @transform_1(%arg0: i32, %arg1: i32) -> (i32, i32) {
    %c1_i32 = arith.constant 1 : i32
    %0 = arith.muli %arg0, %c1_i32 : i32
    %1 = arith.addi %0, %arg1 : i32
    %c0_i32 = arith.constant 0 : i32
    %c0_i32_0 = arith.constant 0 : i32
    return %1, %c0_i32 : i32, i32
  }
  func.func @transform_2(%arg0: i32, %arg1: i32) -> (i32, i32, i32) {
    %c0_i32 = arith.constant 0 : i32
    %c0_i32_0 = arith.constant 0 : i32
    %c0_i32_1 = arith.constant 0 : i32
    return %arg0, %c0_i32, %c0_i32_0 : i32, i32, i32
  }
}

</mosaic_0001>

<llo_original>
// kernel: tpu_custom_call.1
$region0: #{tpu_custom_call.1}
  #allocation0 [shape = 'u32[]', space=smem, size = 0x4, offset = 0x4, fixed_abs, tag = 'smem constant byte address 0x4 - core index']
  #allocation1 [shape = 'u32[144,128]{1,0:T(1,128)}', space=vmem, size = 0x12000, scoped, tag = 'internal scratch']
  %s0 = inlined_call_operand.vmem [shape: f32[16,10], index: 0, kind: input, shape index: {}]
  %s1 = inlined_call_operand.vmem [shape: s32[16,1], index: 1, kind: input, shape index: {}]
  %s2 = inlined_call_operand.hbm [shape: f32[2,1,128], index: 2, kind: output, shape index: {}]
  %s3 = sld [smem:[#allocation0]]
  $region45: #{tpu_custom_call.1} parent=0
    _
  %s5 = ssub.s32 1, %s3
  %s6 = scalar_select 0, %s5, %s3
  $region1: #{tpu_custom_call.1} parent=0
    #allocation2 [shape = 'u8[1024]{0}', space=vmem, size = 0x400, scoped, tag = 'output window, operand 0']
    #allocation3 [shape = 's32[2]{0}', space=sflag, size = 0x8, scoped, tag = 'scoped memory for tpu_custom_call.1']
    %7 = vsyncpa [#allocation3], 0
    %s8 = scalar_lea.sflag [#allocation3], 1
    %9 = vsyncpa %s8, 0
    loop: start=0, step=1, limit=4
    $region2: #{tpu_custom_call.1} parent=1 // loop_pre_header
      _
    $region3: #{tpu_custom_call.1} parent=1 // loop_header
      %s11 = sphi 0, %s15
      %p12 = scmp.ge.s32.totalorder %s11, 4
      %s18 = sphi 0, %s30
      %s19 = sphi 0, %s26
      %s20 = sphi 0, %s18
      %s21 = sphi 0, %s19
      %s22 = sphi 0, %s20
      %s23 = sphi 0, %s21
      %s35 = sphi 0, %s37
      %s38 = sphi 0, %s35
      %s39 = sphi 0, %s38
      %s55 = sphi 0, %s39
      %s63 = sphi 0, %s65
      %s66 = sphi 0, %s63
      %s67 = sphi 0, %s66
      %s83 = sphi 0, %s67
      %s89 = sphi 0, %s91
      %s92 = sphi 0, %s89
      %s93 = sphi 0, %s92
      %s109 = sphi 0, %s93
    $region4: #{tpu_custom_call.1} parent=1 // loop_header_branch
      %14 = sbr.rel (%p12) target = $region8
    $region5: #{tpu_custom_call.1} parent=1 // loop_body
      %s16 = ssub.s32 %s11, 1
      %s17 = ssub.s32 %s11, 2
      %s24 = sadd.s32 1, %s19
      %p25 = scmp.ge.s32.totalorder %s24, 1
      %s26 = scalar_select %p25, 0, %s24
      %s27 = sadd.s32 1, %s18
      %s28 = scalar_select %p25, %s27, %s18
      %p29 = scmp.ge.s32.totalorder %s28, 2
      %s30 = scalar_select %p29, 0, %s28
      %s31 = sadd.s32 %s18, %s19
      %s32 = sadd.s32 %s30, %s26
      %s33 = ssub.s32 %s31, %s32
      %p34 = scmp.eq.s32.totalorder %s33, 0
      %s36 = sadd.s32 %s35, 1
      %s37 = scalar_select %p34, %s35, %s36
      %p40 = pneg %p34
      %p41 = scmp.eq.s32.totalorder %s11, 1
      %p42 = por %p40, %p41
      %p43 = scmp.ne.s32.totalorder %s35, %s38
      %p44 = scmp.eq.s32.totalorder %s11, 0
      %p45 = por %p43, %p44
      %p46 = scmp.ne.s32.totalorder %s35, %s38
      %p47 = scmp.eq.s32.totalorder %s16, 1
      %p48 = por %p46, %p47
      %p49 = scmp.ne.s32.totalorder %s38, %s39
      %p50 = scmp.eq.s32.totalorder %s16, 0
      %p51 = por %p49, %p50
      %p52 = scmp.ne.s32.totalorder %s38, %s39
      %p53 = scmp.eq.s32.totalorder %s17, 1
      %p54 = por %p52, %p53
      %p56 = scmp.ne.s32.totalorder %s39, %s55
      %p57 = scmp.eq.s32.totalorder %s17, 0
      %p58 = por %p56, %p57
      %s59 = sadd.s32 %s18, %s19
      %s60 = sadd.s32 %s30, %s26
      %s61 = ssub.s32 %s59, %s60
      %p62 = scmp.eq.s32.totalorder %s61, 0
      %s64 = sadd.s32 %s63, 1
      %s65 = scalar_select %p62, %s63, %s64
      %p68 = pneg %p62
      %p69 = scmp.eq.s32.totalorder %s11, 1
      %p70 = por %p68, %p69
      %p71 = scmp.ne.s32.totalorder %s63, %s66
      %p72 = scmp.eq.s32.totalorder %s11, 0
      %p73 = por %p71, %p72
      %p74 = scmp.ne.s32.totalorder %s63, %s66
      %p75 = scmp.eq.s32.totalorder %s16, 1
      %p76 = por %p74, %p75
      %p77 = scmp.ne.s32.totalorder %s66, %s67
      %p78 = scmp.eq.s32.totalorder %s16, 0
      %p79 = por %p77, %p78
      %p80 = scmp.ne.s32.totalorder %s66, %s67
      %p81 = scmp.eq.s32.totalorder %s17, 1
      %p82 = por %p80, %p81
      %p84 = scmp.ne.s32.totalorder %s67, %s83
      %p85 = scmp.eq.s32.totalorder %s17, 0
      %p86 = por %p84, %p85
      %s87 = ssub.s32 %s18, %s30
      %p88 = scmp.eq.s32.totalorder %s87, 0
      %s90 = sadd.s32 %s89, 1
      %s91 = scalar_select %p88, %s89, %s90
      %p94 = pneg %p88
      %p95 = scmp.eq.s32.totalorder %s11, 1
      %p96 = por %p94, %p95
      %p97 = scmp.ne.s32.totalorder %s89, %s92
      %p98 = scmp.eq.s32.totalorder %s11, 0
      %p99 = por %p97, %p98
      %p100 = scmp.ne.s32.totalorder %s89, %s92
      %p101 = scmp.eq.s32.totalorder %s16, 1
      %p102 = por %p100, %p101
      %p103 = scmp.ne.s32.totalorder %s92, %s93
      %p104 = scmp.eq.s32.totalorder %s16, 0
      %p105 = por %p103, %p104
      %p106 = scmp.ne.s32.totalorder %s92, %s93
      %p107 = scmp.eq.s32.totalorder %s17, 1
      %p108 = por %p106, %p107
      %p110 = scmp.ne.s32.totalorder %s93, %s109
      %p111 = scmp.eq.s32.totalorder %s17, 0
      %p112 = por %p110, %p111
      %p113 = scmp.le.s32.totalorder 1, %s11
      %p114 = scmp.lt.s32.totalorder %s11, 3
      %p115 = pnand %p113, %p114
      %p116 = pneg %p115
      // Predicated region
      $region9: #{tpu_custom_call.1} parent=5 // pred_check
        _
      $region10: #{tpu_custom_call.1} parent=5 // pred_check_branch
        %118 = sbr.rel (%p115) target = $region12
      $region11: #{tpu_custom_call.1} parent=5 // pred_region
        %s119 = ssub.s32 %s11, 1
      $region12: #{tpu_custom_call.1} parent=5 // pred_fallthru
        _
      %p120 = scmp.lt.s32.totalorder %s11, 2
      // Predicated region
      $region13: #{tpu_custom_call.1} parent=5 // pred_check
        %p121 = pneg %p120
      $region14: #{tpu_custom_call.1} parent=5 // pred_check_branch
        %123 = sbr.rel (%p121) target = $region16
      $region15: #{tpu_custom_call.1} parent=5 // pred_region
        // Predicated region
        $region17: #{tpu_custom_call.1} parent=15 // pred_check
          %p124 = pneg %p45
        $region18: #{tpu_custom_call.1} parent=15 // pred_check_branch
          %126 = sbr.rel (%p124) target = $region20
        $region19: #{tpu_custom_call.1} parent=15 // pred_region
          %s127 = sadd.s32 %s18, %s19
          %p128 = scmp.lt.s32.totalorder %s127, 1
          %s129 = scalar_select %p128, %s127, 1
          %s130 = smul.addr %s129, 8
          %s131 = scalar_lea.vmem %s0, %s130
          %s132 = sadd.s32 %s18, %s19
        $region20: #{tpu_custom_call.1} parent=15 // pred_fallthru
          _
        // Predicated region
        $region21: #{tpu_custom_call.1} parent=15 // pred_check
          %p133 = pneg %p73
        $region22: #{tpu_custom_call.1} parent=15 // pred_check_branch
          %135 = sbr.rel (%p133) target = $region24
        $region23: #{tpu_custom_call.1} parent=15 // pred_region
          %s136 = sadd.s32 %s18, %s19
          %p137 = scmp.lt.s32.totalorder %s136, 1
          %s138 = scalar_select %p137, %s136, 1
          %s139 = smul.addr %s138, 8
          %s140 = scalar_lea.vmem %s1, %s139
          %s141 = sadd.s32 %s18, %s19
        $region24: #{tpu_custom_call.1} parent=15 // pred_fallthru
          _
      $region16: #{tpu_custom_call.1} parent=5 // pred_fallthru
        _
      %p142 = scmp.le.s32.totalorder 1, %s11
      %p143 = scmp.lt.s32.totalorder %s11, 3
      %p144 = pnand %p142, %p143
      %p145 = pneg %p144
      // Predicated region
      $region25: #{tpu_custom_call.1} parent=5 // pred_check
        _
      $region26: #{tpu_custom_call.1} parent=5 // pred_check_branch
        %147 = sbr.rel (%p144) target = $region28
      $region27: #{tpu_custom_call.1} parent=5 // pred_region
        %s148 = ssub.s32 %s11, 1
        %s149 = sadd.s32 %s20, %s21
        %p150 = scmp.lt.s32.totalorder %s149, 1
        %s151 = scalar_select %p150, %s149, 1
        %s152 = smul.addr %s151, 8
        %s153 = scalar_lea.vmem %s0, %s152
        %p154 = pneg %p51
        %p155 = pneg %p48
        %s156 = sadd.s32 %s20, %s21
        %p157 = scmp.lt.s32.totalorder %s156, 1
        %s158 = scalar_select %p157, %s156, 1
        %s159 = smul.addr %s158, 8
        %s160 = scalar_lea.vmem %s1, %s159
        %p161 = pneg %p79
        %p162 = pneg %p76
        %p163 = pneg %p105
        %p164 = pneg %p102
        %s165 = sand.u32 %s92, 1
        %s166 = scalar_lea.sflag [#allocation3], %s165
        %s167 = sand.u32 %s92, 1
        %s168 = scalar_lea.vmem [#allocation2], %s167
        %s169 = sadd.s32 %s20, %s21
        %p170 = scmp.lt.s32.totalorder %s169, 1
        %s171 = scalar_select %p170, %s169, 1
        %s172 = smul.addr %s171, 8
        %s173 = scalar_lea.vmem %s0, %s172
        %s174 = sadd.s32 %s20, %s21
        %s175 = sadd.s32 %s20, %s21
        %p176 = scmp.lt.s32.totalorder %s175, 1
        %s177 = scalar_select %p176, %s175, 1
        %s178 = smul.addr %s177, 8
        %s179 = scalar_lea.vmem %s1, %s178
        %s180 = sadd.s32 %s20, %s21
        %p181 = scmp.eq.s32.totalorder %s21, 0
        // Predicated region
        $region29: #{tpu_custom_call.1} parent=27 // pred_check
          %p182 = pneg %p181
        $region30: #{tpu_custom_call.1} parent=27 // pred_check_branch
          %184 = sbr.rel (%p182) target = $region32
        $region31: #{tpu_custom_call.1} parent=27 // pred_region
          %185 = vst [vmem:[%s168] sm:$0x1] 0.0
        $region32: #{tpu_custom_call.1} parent=27 // pred_fallthru
          _
        %v186 = vld [vmem:[%s173] sm:$0xff]
        %v187 = vld [vmem:[%s179] sm:$0xff]
        %v188 = vlaneseq
        %v189 = vand.u32 %v188, 127
        %190 = vset.pattern.permute.xlu0 0
        %191 = vperm.xlu0 %190, %v187
        %v192 = vpop.permute.xlu0 %191
        %vm193 = vcmp.eq.s32.totalorder %v189, %v192
        %v194 = vld [vmem:[%s168] sm:$0x1]
        %v195 = vsel %vm193, %v186, 0.0
        %vm196 = vcmask 80896
        %v197 = vsel %vm196, %v195, 0.0
        %198 = vadd.xlane.f32.xlu0 %v197
        %v199 = vpop.xlane.xlu0 %198
        %v200 = vrot.slane %v199, 4
        %v201 = vadd.f32 %v199, %v200
        %v202 = vrot.slane %v201, 2
        %v203 = vadd.f32 %v201, %v202
        %v204 = vrot.slane %v203, 1
        %v205 = vadd.f32 %v203, %v204
        %s206 = vtos %v205
        %s207 = ssub.f32 0.0, %s206
        %v208 = vstv %s207
        %v209 = vadd.f32 %v194, %v208
        %210 = vst [vmem:[%s168] sm:$0x1] %v209
        %s211 = sand.u32 %s92, 1
        %s212 = scalar_lea.sflag [#allocation3], %s211
        %s213 = sand.u32 %s92, 1
        %s214 = scalar_lea.vmem [#allocation2], %s213
        // Predicated region
        $region33: #{tpu_custom_call.1} parent=27 // pred_check
          %p215 = pneg %p102
        $region34: #{tpu_custom_call.1} parent=27 // pred_check_branch
          %217 = sbr.rel (%p215) target = $region36
        $region35: #{tpu_custom_call.1} parent=27 // pred_region
          %s219 = ssub.s32 16, 16
          %220 = vsyncadd %s212, %s219
          %s221 = smul.addr %s20, 16
          %s222 = scalar_lea.hbm %s2, %s221
          %s224 = sshll.u32 %s214, 4
          %s225 = int_to_ptr.vmem [resolvable:$true] %s224
          %227 = dma.vmem_to_hbm [thread:$0]  %s225, 16, %s222, %s212
        $region36: #{tpu_custom_call.1} parent=27 // pred_fallthru
          _
      $region28: #{tpu_custom_call.1} parent=5 // pred_fallthru
        _
      %p228 = scmp.le.s32.totalorder 2, %s11
      // Predicated region
      $region37: #{tpu_custom_call.1} parent=5 // pred_check
        %p229 = pneg %p228
      $region38: #{tpu_custom_call.1} parent=5 // pred_check_branch
        %231 = sbr.rel (%p229) target = $region40
      $region39: #{tpu_custom_call.1} parent=5 // pred_region
        %s232 = ssub.s32 %s11, 2
        // Predicated region
        $region41: #{tpu_custom_call.1} parent=39 // pred_check
          %p233 = pneg %p108
        $region42: #{tpu_custom_call.1} parent=39 // pred_check_branch
          %235 = sbr.rel (%p233) target = $region44
        $region43: #{tpu_custom_call.1} parent=39 // pred_region
          %s236 = sand.u32 %s93, 1
          %s237 = scalar_lea.sflag [#allocation3], %s236
          %s238 = sand.u32 %s93, 1
          %s239 = scalar_lea.vmem [#allocation2], %s238
          %240 = dma.done %s237, 16
        $region44: #{tpu_custom_call.1} parent=39 // pred_fallthru
          _
      $region40: #{tpu_custom_call.1} parent=5 // pred_fallthru
        _
    $region6: #{tpu_custom_call.1} parent=1 // loop_footer
      %s15 = sadd.s32 1, %s11
    $region7: #{tpu_custom_call.1} parent=1 // loop_footer_branch
      %10 = sbr.rel target = $region3
    $region8: #{tpu_custom_call.1} parent=1 // loop_exit
      _
    %241 = vsyncpa [#allocation3], 1
    %s242 = scalar_lea.sflag [#allocation3], 1
    %243 = vsyncpa %s242, 1

</llo_original>
